<compile_context>
chip_gen: v7x
topology: tpu7x:2x2x1
jax: 0.10.0
libtpu: 0.0.40
codegen_flags: <defaults>
</compile_context>

<pallas_src>
from math import sqrt

import numpy as np

import jax
import jax.numpy as jnp
from jax import lax
from jax.experimental import pallas as pl
from jax.experimental.pallas import tpu as pltpu


# ----------------------------------------------------------------------------
# init-time weight preprocessing (host, runs once per parameter set)
# ----------------------------------------------------------------------------
def _round_up(n, m):
    return ((n + m - 1) // m) * m


def _deconv_as_matrix(w_t, H, W, output_padding, stride=2, padding=1):
    """Fold a PyTorch ConvTranspose2d (weight layout (CI, CO, k, k), stride=2,
    padding=1, given output_padding) into the exact dense matrix G such that
        flatten_NCHW(out)[n] = flatten_NCHW(x)[n] @ G.
    (Bias excluded: it cancels under the training-mode BatchNorm that follows.)"""
    CI, CO, k, _ = w_t.shape
    OH = (H - 1) * stride - 2 * padding + k + output_padding
    OW = (W - 1) * stride - 2 * padding + k + output_padding
    Sr = np.zeros((k, OH, H), np.float32)   # Sr[kh, oh, ih] = [oh == ih*s - p + kh]
    Sc = np.zeros((k, OW, W), np.float32)   # Sc[kw, ow, iw] = [ow == iw*s - p + kw]
    for kk in range(k):
        for ih in range(H):
            oh = ih * stride - padding + kk
            if 0 <= oh < OH:
                Sr[kk, oh, ih] = 1.0
        for iw in range(W):
            ow = iw * stride - padding + kk
            if 0 <= ow < OW:
                Sc[kk, ow, iw] = 1.0
    # G[(ci,ih,iw),(co,oh,ow)] = sum_{kh,kw} w_t[ci,co,kh,kw] * Sr[kh,oh,ih] * Sc[kw,ow,iw]
    G = np.einsum("ickl,koh,lpw->ihwcop", w_t.astype(np.float32), Sr, Sc)
    return G.reshape(CI * H * W, CO * OH * OW), OH, OW


def _prepare_kernel_operands(params):
    """Flat list of kernel operands (lane-padded, bf16 for the big matrices)."""
    ops = []
    meta = []
    dense_w = np.asarray(params["dense_w"], np.float32)
    dense_b = np.asarray(params["dense_b"], np.float32).reshape(1, -1)
    n_latent, n_fc = dense_w.shape
    l0_pad = _round_up(n_fc, 128)
    dw = np.zeros((n_latent, l0_pad), np.float32)
    dw[:, :n_fc] = dense_w
    db = np.zeros((1, l0_pad), np.float32)
    db[:, :n_fc] = dense_b
    ops += [jnp.asarray(dw, jnp.bfloat16), jnp.asarray(db, jnp.float32)]

    H = W = params["filter_size"]
    l_in_real, l_in_pad = n_fc, l0_pad
    l_out_real, l_out_pad = n_fc, l0_pad
    for blk in params["blocks"]:
        CO = blk["w"].shape[1]
        G, OH, OW = _deconv_as_matrix(np.asarray(blk["w"]), H, W,
                                      blk["output_padding"])
        ohow = OH * OW
        l_out_real = CO * ohow
        l_out_pad = _round_up(l_out_real, 128)
        co_pad = max(8, _round_up(CO, 8))

        Gp = np.zeros((l_in_pad, l_out_pad), np.float32)
        Gp[:l_in_real, :l_out_real] = G             # padded rows/cols are zero

        # 0/1 indicator maps between per-channel and per-position vectors,
        # restricted to REAL channels and REAL positions (padding stays zero).
        M = np.zeros((l_out_pad, co_pad), np.float32)
        for co in range(CO):
            M[co * ohow:(co + 1) * ohow, co] = 1.0
        Mt = np.ascontiguousarray(M.T)

        gam = np.zeros((1, co_pad), np.float32)
        gam[0, :CO] = np.asarray(blk["gamma"], np.float32)
        bet = np.zeros((1, co_pad), np.float32)
        bet[0, :CO] = np.asarray(blk["beta"], np.float32)

        ops += [jnp.asarray(Gp, jnp.bfloat16), jnp.asarray(gam), jnp.asarray(bet),
                jnp.asarray(M), jnp.asarray(Mt)]
        # NOTE: blk["b"] (ConvTranspose2d bias) is intentionally NOT an operand:
        # a per-channel constant added before training-mode BN cancels exactly.
        meta.append(dict(ohow=ohow, l_in_pad=l_in_pad, l_out_pad=l_out_pad,
                         co_pad=co_pad))
        H, W = OH, OW
        l_in_real, l_in_pad = l_out_real, l_out_pad

    return ops, meta, l_out_real, l_out_pad, l0_pad


# ----------------------------------------------------------------------------
# fused Pallas kernel
# ----------------------------------------------------------------------------
def _bn_elu(y, gamma, beta, M, Mt, n_real, ohow, eps=1e-5):
    """Training-mode BatchNorm2d + ELU on lane-dense y of shape (N_pad, L_pad).
    Padded batch rows / lane positions / channels are excluded from statistics."""
    n_pad = y.shape[0]
    # One stats matmul: rows [0, n_pad) carry y, rows [n_pad, 2*n_pad) carry y*y.
    sq = jnp.dot(jnp.concatenate([y, y * y], axis=0), M,
                 preferred_element_type=jnp.float32)              # (2*N_pad, CO_pad)
    s = jnp.sum(sq[:n_real], axis=0, keepdims=True)               # real batch rows only
    q = jnp.sum(sq[n_pad:n_pad + n_real], axis=0, keepdims=True)
    inv_cnt = 1.0 / float(n_real * ohow)
    mean = s * inv_cnt
    # TODO(synk): single-pass E[x^2]-E[x]^2 can cancel when |mean| >> std; switch to
    # a shifted / two-pass variance if that regime ever occurs.
    var = jnp.maximum(q * inv_cnt - mean * mean, 0.0)             # biased (BN train)
    a = gamma * lax.rsqrt(var + eps)                              # (1, CO_pad)
    b = beta - mean * a
    # One broadcast matmul: per-channel [a; b] -> per-position (2, L_pad).
    ab = jnp.dot(jnp.concatenate([a, b], axis=0), Mt,
                 preferred_element_type=jnp.float32)
    y = y * ab[0:1] + ab[1:2]
    # ELU(alpha=1); clamp the exp argument so the untaken branch cannot overflow.
    # TODO(synk): expm1 would be slightly more accurate for tiny negative y.
    return jnp.where(y > 0.0, y, jnp.exp(jnp.minimum(y, 0.0)) - 1.0)


def make_decoder_kernel(n_blocks, n_real, ohows):
    def kernel(*refs):
        z_ref, wd_ref, bd_ref = refs[0:3]
        o_ref = refs[-1]
        # dense + ReLU (bf16 MXU matmul, f32 accumulate; bias/ReLU in f32)
        y = jnp.dot(z_ref[...], wd_ref[...], preferred_element_type=jnp.float32)
        y = jnp.maximum(y + bd_ref[...], 0.0)        # (N_pad, L0_pad) lane-dense
        idx = 3
        for blk in range(n_blocks):
            g_ref, gamma_ref, beta_ref, m_ref, mt_ref = refs[idx:idx + 5]
            idx += 5
            # ConvTranspose2d folded into ONE lane-dense bf16 MXU matmul
            y = jnp.dot(y.astype(jnp.bfloat16), g_ref[...],
                        preferred_element_type=jnp.float32)
            y = _bn_elu(y, gamma_ref[...], beta_ref[...], m_ref[...], mt_ref[...],
                        n_real=n_real, ohow=ohows[blk])
        o_ref[...] = y                               # == res.flatten(1), lane-padded
    return kernel


# ----------------------------------------------------------------------------
# pallas_call wrapper
# ----------------------------------------------------------------------------
def base_decoder_forward(params, z):
    n_real, n_latent = z.shape
    n_pad = max(8, _round_up(n_real, 8))             # fill f32 sublanes / MXU rows
    zp = jnp.zeros((n_pad, n_latent), jnp.bfloat16).at[:n_real].set(
        z.astype(jnp.bfloat16))

    args = [zp] + list(params["_kernel_ops"])
    meta = params["_kernel_meta"]
    out_pad = params["_out_pad"]

    # advisory cost estimate (MXU flops, EUP transcendentals, HBM bytes)
    flops = 2 * n_pad * n_latent * params["_l0_pad"]
    trans = 0
    for m in meta:
        flops += (2 * n_pad * m["l_in_pad"] * m["l_out_pad"]            # deconv
                  + 2 * (2 * n_pad) * m["l_out_pad"] * m["co_pad"]      # stats
                  + 2 * 2 * m["co_pad"] * m["l_out_pad"])               # broadcast
        trans += n_pad * m["l_out_pad"]                                 # exp (ELU)
    bytes_accessed = sum(int(a.size) * a.dtype.itemsize for a in args)
    bytes_accessed += n_pad * out_pad * 4

    out = pl.pallas_call(
        make_decoder_kernel(len(params["blocks"]), n_real,
                            [m["ohow"] for m in meta]),
        out_shape=jax.ShapeDtypeStruct((n_pad, out_pad), jnp.float32),
        in_specs=[pl.BlockSpec(memory_space=pltpu.MemorySpace.VMEM) for _ in args],
        out_specs=pl.BlockSpec(memory_space=pltpu.MemorySpace.VMEM),
        cost_estimate=pl.CostEstimate(flops=int(flops), transcendentals=int(trans),
                                      bytes_accessed=int(bytes_accessed)),
    )(*args)
    return out[:n_real, :params["_out_dim"]]


# ----------------------------------------------------------------------------
# parameters
# ----------------------------------------------------------------------------
def init_base_decoder_params(key, n_latent, n_deconv_blocks, in_channels, n_fc):
    params = {}
    k_dw, k_db, key = jax.random.split(key, 3)
    params["dense_w"] = (jax.random.normal(k_dw, (n_latent, n_fc), jnp.float32)
                         / jnp.sqrt(float(n_latent)))
    params["dense_b"] = 0.1 * jax.random.normal(k_db, (1, n_fc), jnp.float32)
    params["in_channels"] = in_channels
    params["filter_size"] = int(sqrt(n_fc / in_channels))

    blocks = []
    ci = in_channels
    for i in range(n_deconv_blocks):
        out_padding = 0 if i == 0 else 1
        co = 1 if i == n_deconv_blocks - 1 else in_channels // 2
        kw_, kb_, key = jax.random.split(key, 3)
        w_t = (jax.random.normal(kw_, (ci, co, 3, 3), jnp.float32)
               / jnp.sqrt(float(ci * 9)))
        bias = 0.1 * jax.random.normal(kb_, (co,), jnp.float32)
        blocks.append(dict(w=w_t, b=bias,                       # bias kept for fidelity
                           gamma=jnp.ones((co,), jnp.float32),  # (cancels under BN)
                           beta=jnp.zeros((co,), jnp.float32),
                           output_padding=out_padding))
        ci = co
    params["blocks"] = blocks
    # one-time weight preprocessing for the fused kernel
    (params["_kernel_ops"], params["_kernel_meta"], params["_out_dim"],
     params["_out_pad"], params["_l0_pad"]) = _prepare_kernel_operands(params)
    # TODO(synk): BatchNorm2d running statistics (eval mode) are not tracked;
    # only the training-mode forward is implemented.
    return params


# ----------------------------------------------------------------------------
# plain NumPy (float64) reference of the PyTorch module for validation
# ----------------------------------------------------------------------------
def _reference_forward(params, z):
    y = np.asarray(z, np.float64) @ np.asarray(params["dense_w"], np.float64)
    y = np.maximum(y + np.asarray(params["dense_b"], np.float64), 0.0)
    x = y.reshape(y.shape[0], params["in_channels"],
                  params["filter_size"], params["filter_size"])
    for blk in params["blocks"]:
        w = np.asarray(blk["w"], np.float64)                  # (CI, CO, 3, 3)
        CI, CO, k, _ = w.shape
        N, _, H, W = x.shape
        op = blk["output_padding"]
        OH = (H - 1) * 2 - 2 + k + op
        OW = (W - 1) * 2 - 2 + k + op
        out = np.zeros((N, CO, OH, OW), np.float64)
        for ih in range(H):
            for kh in range(k):
                oh = ih * 2 - 1 + kh
                if not (0 <= oh < OH):
                    continue
                for iw in range(W):
                    for kw in range(k):
                        ow = iw * 2 - 1 + kw
                        if not (0 <= ow < OW):
                            continue
                        out[:, :, oh, ow] += x[:, :, ih, iw] @ w[:, :, kh, kw]
        out += np.asarray(blk["b"], np.float64).reshape(1, CO, 1, 1)
        mean = out.mean(axis=(0, 2, 3), keepdims=True)
        var = out.var(axis=(0, 2, 3), keepdims=True)          # biased, as BN train
        out = (out - mean) / np.sqrt(var + 1e-5)
        out = (out * np.asarray(blk["gamma"], np.float64).reshape(1, CO, 1, 1)
               + np.asarray(blk["beta"], np.float64).reshape(1, CO, 1, 1))
        x = np.where(out > 0.0, out, np.exp(np.minimum(out, 0.0)) - 1.0)
    return x.reshape(x.shape[0], -1)


# ----------------------------------------------------------------------------
if __name__ == "__main__":
    n_latent = 8
    n_deconv_blocks = 2
    in_channels = 4
    n_fc = 64            # -> filter_size = 4; spatial 4 -> 7 -> 14
    batch = 2

    key = jax.random.PRNGKey(0)
    k_params, k_z = jax.random.split(key)
    params = init_base_decoder_params(k_params, n_latent, n_deconv_blocks,
                                      in_channels, n_fc)
    z = jax.random.normal(k_z, (batch, n_latent), jnp.float32)

    out = jax.block_until_ready(base_decoder_forward(params, z))

    assert out.shape == (batch, 1 * 14 * 14), out.shape
    assert bool(jnp.all(jnp.isfinite(out)))

    # numerical check against the float64 reference of the PyTorch forward
    ref = _reference_forward(params, np.asarray(z))
    max_err = float(np.max(np.abs(np.asarray(out, np.float64) - ref)))
    assert max_err < 0.1, f"max |err| vs reference = {max_err}"

    # TODO(synk): BaseDecoder.output() is abstract (NotImplementedError) in the
    # reference module; the flattened deconv features are returned unchanged.
    print("KERNEL_OK")
</pallas_src>

<mosaic_0001>
module attributes {stable_mosaic.version = 11 : i64} {
  func.func @kernel(%arg0: memref<8x8xbf16, #tpu.memory_space<vmem>>, %arg1: memref<8x128xbf16, #tpu.memory_space<vmem>>, %arg2: memref<1x128xf32, #tpu.memory_space<vmem>>, %arg3: memref<128x128xbf16, #tpu.memory_space<vmem>>, %arg4: memref<1x8xf32, #tpu.memory_space<vmem>>, %arg5: memref<1x8xf32, #tpu.memory_space<vmem>>, %arg6: memref<128x8xf32, #tpu.memory_space<vmem>>, %arg7: memref<8x128xf32, #tpu.memory_space<vmem>>, %arg8: memref<128x256xbf16, #tpu.memory_space<vmem>>, %arg9: memref<1x8xf32, #tpu.memory_space<vmem>>, %arg10: memref<1x8xf32, #tpu.memory_space<vmem>>, %arg11: memref<256x8xf32, #tpu.memory_space<vmem>>, %arg12: memref<8x256xf32, #tpu.memory_space<vmem>>, %arg13: memref<8x256xf32, #tpu.memory_space<vmem>>) attributes {dimension_semantics = [], scalar_prefetch = 0 : i64, scratch_operands = 0 : i64, tpu.core_type = #tpu.core_type<tc>} {
    %c0 = arith.constant 0 : index
    %c0_0 = arith.constant 0 : index
    %0 = vector.load %arg0[%c0, %c0_0] : memref<8x8xbf16, #tpu.memory_space<vmem>>, vector<8x8xbf16>
    %c0_1 = arith.constant 0 : index
    %c0_2 = arith.constant 0 : index
    %1 = vector.load %arg1[%c0_1, %c0_2] : memref<8x128xbf16, #tpu.memory_space<vmem>>, vector<8x128xbf16>
    %cst = arith.constant dense<0.000000e+00> : vector<8x128xf32>
    %2 = tpu.matmul %0, %1, %cst {dimension_numbers = #tpu.dot_dimension_numbers<[1], [0], [0], [1], [0, 0, 1, 1], [], []>} : vector<8x8xbf16>, vector<8x128xbf16>, vector<8x128xf32> -> vector<8x128xf32>
    %c0_3 = arith.constant 0 : index
    %c0_4 = arith.constant 0 : index
    %3 = vector.load %arg2[%c0_3, %c0_4] : memref<1x128xf32, #tpu.memory_space<vmem>>, vector<1x128xf32>
    %4 = vector.broadcast %3 : vector<1x128xf32> to vector<8x128xf32>
    %5 = arith.addf %2, %4 : vector<8x128xf32>
    %cst_5 = arith.constant 0.000000e+00 : f32
    %6 = vector.broadcast %cst_5 : f32 to vector<8x128xf32>
    %7 = arith.maximumf %5, %6 : vector<8x128xf32>
    %8 = arith.truncf %7 : vector<8x128xf32> to vector<8x128xbf16>
    %c0_6 = arith.constant 0 : index
    %c0_7 = arith.constant 0 : index
    %9 = vector.load %arg3[%c0_6, %c0_7] : memref<128x128xbf16, #tpu.memory_space<vmem>>, vector<128x128xbf16>
    %cst_8 = arith.constant dense<0.000000e+00> : vector<8x128xf32>
    %10 = tpu.matmul %8, %9, %cst_8 {dimension_numbers = #tpu.dot_dimension_numbers<[1], [0], [0], [1], [0, 0, 1, 1], [], []>} : vector<8x128xbf16>, vector<128x128xbf16>, vector<8x128xf32> -> vector<8x128xf32>
    %c0_9 = arith.constant 0 : index
    %c0_10 = arith.constant 0 : index
    %11 = vector.load %arg4[%c0_9, %c0_10] : memref<1x8xf32, #tpu.memory_space<vmem>>, vector<1x8xf32>
    %c0_11 = arith.constant 0 : index
    %c0_12 = arith.constant 0 : index
    %12 = vector.load %arg5[%c0_11, %c0_12] : memref<1x8xf32, #tpu.memory_space<vmem>>, vector<1x8xf32>
    %c0_13 = arith.constant 0 : index
    %c0_14 = arith.constant 0 : index
    %13 = vector.load %arg6[%c0_13, %c0_14] : memref<128x8xf32, #tpu.memory_space<vmem>>, vector<128x8xf32>
    %c0_15 = arith.constant 0 : index
    %c0_16 = arith.constant 0 : index
    %14 = vector.load %arg7[%c0_15, %c0_16] : memref<8x128xf32, #tpu.memory_space<vmem>>, vector<8x128xf32>
    %15 = arith.mulf %10, %10 : vector<8x128xf32>
    %16 = tpu.concatenate %10, %15 in 0 : vector<8x128xf32>, vector<8x128xf32> -> vector<16x128xf32>
    %cst_17 = arith.constant dense<0.000000e+00> : vector<16x8xf32>
    %17 = tpu.matmul %16, %13, %cst_17 {dimension_numbers = #tpu.dot_dimension_numbers<[1], [0], [0], [1], [0, 0, 1, 1], [], []>} : vector<16x128xf32>, vector<128x8xf32>, vector<16x8xf32> -> vector<16x8xf32>
    %18 = vector.extract_strided_slice %17 {offsets = [0, 0], sizes = [2, 8], strides = [1, 1]} : vector<16x8xf32> to vector<2x8xf32>
    %cst_18 = arith.constant dense<0.000000e+00> : vector<8xf32>
    %19 = vector.multi_reduction <add>, %18, %cst_18 [0] : vector<2x8xf32> to vector<8xf32>
    %20 = vector.shape_cast %19 : vector<8xf32> to vector<1x8xf32>
    %21 = vector.extract_strided_slice %17 {offsets = [8, 0], sizes = [2, 8], strides = [1, 1]} : vector<16x8xf32> to vector<2x8xf32>
    %cst_19 = arith.constant dense<0.000000e+00> : vector<8xf32>
    %22 = vector.multi_reduction <add>, %21, %cst_19 [0] : vector<2x8xf32> to vector<8xf32>
    %23 = vector.shape_cast %22 : vector<8xf32> to vector<1x8xf32>
    %cst_20 = arith.constant 0.0102040814 : f32
    %24 = vector.broadcast %cst_20 : f32 to vector<1x8xf32>
    %25 = arith.mulf %20, %24 : vector<1x8xf32>
    %cst_21 = arith.constant 0.0102040814 : f32
    %26 = vector.broadcast %cst_21 : f32 to vector<1x8xf32>
    %27 = arith.mulf %23, %26 : vector<1x8xf32>
    %28 = arith.mulf %25, %25 : vector<1x8xf32>
    %29 = arith.subf %27, %28 : vector<1x8xf32>
    %cst_22 = arith.constant 0.000000e+00 : f32
    %30 = vector.broadcast %cst_22 : f32 to vector<1x8xf32>
    %31 = arith.maximumf %29, %30 : vector<1x8xf32>
    %cst_23 = arith.constant 9.99999974E-6 : f32
    %32 = vector.broadcast %cst_23 : f32 to vector<1x8xf32>
    %33 = arith.addf %31, %32 : vector<1x8xf32>
    %34 = math.rsqrt %33 : vector<1x8xf32>
    %35 = arith.mulf %11, %34 : vector<1x8xf32>
    %36 = arith.mulf %25, %35 : vector<1x8xf32>
    %37 = arith.subf %12, %36 : vector<1x8xf32>
    %38 = tpu.concatenate %35, %37 in 0 : vector<1x8xf32>, vector<1x8xf32> -> vector<2x8xf32>
    %cst_24 = arith.constant dense<0.000000e+00> : vector<2x128xf32>
    %39 = tpu.matmul %38, %14, %cst_24 {dimension_numbers = #tpu.dot_dimension_numbers<[1], [0], [0], [1], [0, 0, 1, 1], [], []>} : vector<2x8xf32>, vector<8x128xf32>, vector<2x128xf32> -> vector<2x128xf32>
    %40 = vector.extract_strided_slice %39 {offsets = [0, 0], sizes = [1, 128], strides = [1, 1]} : vector<2x128xf32> to vector<1x128xf32>
    %41 = vector.broadcast %40 : vector<1x128xf32> to vector<8x128xf32>
    %42 = arith.mulf %10, %41 : vector<8x128xf32>
    %43 = vector.extract_strided_slice %39 {offsets = [1, 0], sizes = [1, 128], strides = [1, 1]} : vector<2x128xf32> to vector<1x128xf32>
    %44 = vector.broadcast %43 : vector<1x128xf32> to vector<8x128xf32>
    %45 = arith.addf %42, %44 : vector<8x128xf32>
    %cst_25 = arith.constant 0.000000e+00 : f32
    %46 = vector.broadcast %cst_25 : f32 to vector<8x128xf32>
    %47 = arith.cmpf ogt, %45, %46 : vector<8x128xf32>
    %cst_26 = arith.constant 0.000000e+00 : f32
    %48 = vector.broadcast %cst_26 : f32 to vector<8x128xf32>
    %49 = arith.minimumf %45, %48 : vector<8x128xf32>
    %50 = math.exp %49 : vector<8x128xf32>
    %cst_27 = arith.constant 1.000000e+00 : f32
    %51 = vector.broadcast %cst_27 : f32 to vector<8x128xf32>
    %52 = arith.subf %50, %51 : vector<8x128xf32>
    %53 = arith.select %47, %45, %52 : vector<8x128xi1>, vector<8x128xf32>
    %54 = arith.truncf %53 : vector<8x128xf32> to vector<8x128xbf16>
    %c0_28 = arith.constant 0 : index
    %c0_29 = arith.constant 0 : index
    %55 = vector.load %arg8[%c0_28, %c0_29] : memref<128x256xbf16, #tpu.memory_space<vmem>>, vector<128x256xbf16>
    %cst_30 = arith.constant dense<0.000000e+00> : vector<8x256xf32>
    %56 = tpu.matmul %54, %55, %cst_30 {dimension_numbers = #tpu.dot_dimension_numbers<[1], [0], [0], [1], [0, 0, 1, 1], [], []>} : vector<8x128xbf16>, vector<128x256xbf16>, vector<8x256xf32> -> vector<8x256xf32>
    %c0_31 = arith.constant 0 : index
    %c0_32 = arith.constant 0 : index
    %57 = vector.load %arg9[%c0_31, %c0_32] : memref<1x8xf32, #tpu.memory_space<vmem>>, vector<1x8xf32>
    %c0_33 = arith.constant 0 : index
    %c0_34 = arith.constant 0 : index
    %58 = vector.load %arg10[%c0_33, %c0_34] : memref<1x8xf32, #tpu.memory_space<vmem>>, vector<1x8xf32>
    %c0_35 = arith.constant 0 : index
    %c0_36 = arith.constant 0 : index
    %59 = vector.load %arg11[%c0_35, %c0_36] : memref<256x8xf32, #tpu.memory_space<vmem>>, vector<256x8xf32>
    %c0_37 = arith.constant 0 : index
    %c0_38 = arith.constant 0 : index
    %60 = vector.load %arg12[%c0_37, %c0_38] : memref<8x256xf32, #tpu.memory_space<vmem>>, vector<8x256xf32>
    %61 = arith.mulf %56, %56 : vector<8x256xf32>
    %62 = tpu.concatenate %56, %61 in 0 : vector<8x256xf32>, vector<8x256xf32> -> vector<16x256xf32>
    %cst_39 = arith.constant dense<0.000000e+00> : vector<16x8xf32>
    %63 = tpu.matmul %62, %59, %cst_39 {dimension_numbers = #tpu.dot_dimension_numbers<[1], [0], [0], [1], [0, 0, 1, 1], [], []>} : vector<16x256xf32>, vector<256x8xf32>, vector<16x8xf32> -> vector<16x8xf32>
    %64 = vector.extract_strided_slice %63 {offsets = [0, 0], sizes = [2, 8], strides = [1, 1]} : vector<16x8xf32> to vector<2x8xf32>
    %cst_40 = arith.constant dense<0.000000e+00> : vector<8xf32>
    %65 = vector.multi_reduction <add>, %64, %cst_40 [0] : vector<2x8xf32> to vector<8xf32>
    %66 = vector.shape_cast %65 : vector<8xf32> to vector<1x8xf32>
    %67 = vector.extract_strided_slice %63 {offsets = [8, 0], sizes = [2, 8], strides = [1, 1]} : vector<16x8xf32> to vector<2x8xf32>
    %cst_41 = arith.constant dense<0.000000e+00> : vector<8xf32>
    %68 = vector.multi_reduction <add>, %67, %cst_41 [0] : vector<2x8xf32> to vector<8xf32>
    %69 = vector.shape_cast %68 : vector<8xf32> to vector<1x8xf32>
    %cst_42 = arith.constant 0.00255102036 : f32
    %70 = vector.broadcast %cst_42 : f32 to vector<1x8xf32>
    %71 = arith.mulf %66, %70 : vector<1x8xf32>
    %cst_43 = arith.constant 0.00255102036 : f32
    %72 = vector.broadcast %cst_43 : f32 to vector<1x8xf32>
    %73 = arith.mulf %69, %72 : vector<1x8xf32>
    %74 = arith.mulf %71, %71 : vector<1x8xf32>
    %75 = arith.subf %73, %74 : vector<1x8xf32>
    %cst_44 = arith.constant 0.000000e+00 : f32
    %76 = vector.broadcast %cst_44 : f32 to vector<1x8xf32>
    %77 = arith.maximumf %75, %76 : vector<1x8xf32>
    %cst_45 = arith.constant 9.99999974E-6 : f32
    %78 = vector.broadcast %cst_45 : f32 to vector<1x8xf32>
    %79 = arith.addf %77, %78 : vector<1x8xf32>
    %80 = math.rsqrt %79 : vector<1x8xf32>
    %81 = arith.mulf %57, %80 : vector<1x8xf32>
    %82 = arith.mulf %71, %81 : vector<1x8xf32>
    %83 = arith.subf %58, %82 : vector<1x8xf32>
    %84 = tpu.concatenate %81, %83 in 0 : vector<1x8xf32>, vector<1x8xf32> -> vector<2x8xf32>
    %cst_46 = arith.constant dense<0.000000e+00> : vector<2x256xf32>
    %85 = tpu.matmul %84, %60, %cst_46 {dimension_numbers = #tpu.dot_dimension_numbers<[1], [0], [0], [1], [0, 0, 1, 1], [], []>} : vector<2x8xf32>, vector<8x256xf32>, vector<2x256xf32> -> vector<2x256xf32>
    %86 = vector.extract_strided_slice %85 {offsets = [0, 0], sizes = [1, 256], strides = [1, 1]} : vector<2x256xf32> to vector<1x256xf32>
    %87 = vector.broadcast %86 : vector<1x256xf32> to vector<8x256xf32>
    %88 = arith.mulf %56, %87 : vector<8x256xf32>
    %89 = vector.extract_strided_slice %85 {offsets = [1, 0], sizes = [1, 256], strides = [1, 1]} : vector<2x256xf32> to vector<1x256xf32>
    %90 = vector.broadcast %89 : vector<1x256xf32> to vector<8x256xf32>
    %91 = arith.addf %88, %90 : vector<8x256xf32>
    %cst_47 = arith.constant 0.000000e+00 : f32
    %92 = vector.broadcast %cst_47 : f32 to vector<8x256xf32>
    %93 = arith.cmpf ogt, %91, %92 : vector<8x256xf32>
    %cst_48 = arith.constant 0.000000e+00 : f32
    %94 = vector.broadcast %cst_48 : f32 to vector<8x256xf32>
    %95 = arith.minimumf %91, %94 : vector<8x256xf32>
    %96 = math.exp %95 : vector<8x256xf32>
    %cst_49 = arith.constant 1.000000e+00 : f32
    %97 = vector.broadcast %cst_49 : f32 to vector<8x256xf32>
    %98 = arith.subf %96, %97 : vector<8x256xf32>
    %99 = arith.select %93, %91, %98 : vector<8x256xi1>, vector<8x256xf32>
    %c0_50 = arith.constant 0 : index
    %c0_51 = arith.constant 0 : index
    %100 = vector.load %arg13[%c0_50, %c0_51] : memref<8x256xf32, #tpu.memory_space<vmem>>, vector<8x256xf32>
    tpu.vector_store %arg13[%c0_50, %c0_51], %99 {strides = array<i32>} : memref<8x256xf32, #tpu.memory_space<vmem>>, vector<8x256xf32>,
    return
  }
}

</mosaic_0001>

<llo_original>
// kernel: tpu_custom_call.1
$region0: #{tpu_custom_call.1}
  #allocation0 [shape = 'u32[]', space=smem, size = 0x4, offset = 0x4, fixed_abs, tag = 'smem constant byte address 0x4 - core index']
  #allocation1 [shape = 'u32[144,128]{1,0:T(1,128)}', space=vmem, size = 0x12000, scoped, tag = 'internal scratch']
  %s0 = inlined_call_operand.vmem [shape: bf16[8,8], index: 0, kind: input, shape index: {}]
  %s1 = inlined_call_operand.vmem [shape: bf16[8,128], index: 1, kind: input, shape index: {}]
  %s2 = inlined_call_operand.vmem [shape: f32[1,128], index: 2, kind: input, shape index: {}]
  %s3 = inlined_call_operand.vmem [shape: bf16[128,128], index: 3, kind: input, shape index: {}]
  %s4 = inlined_call_operand.vmem [shape: f32[1,8], index: 4, kind: input, shape index: {}]
  %s5 = inlined_call_operand.vmem [shape: f32[1,8], index: 5, kind: input, shape index: {}]
  %s6 = inlined_call_operand.vmem [shape: f32[128,8], index: 6, kind: input, shape index: {}]
  %s7 = inlined_call_operand.vmem [shape: f32[8,128], index: 7, kind: input, shape index: {}]
  %s8 = inlined_call_operand.vmem [shape: bf16[128,256], index: 8, kind: input, shape index: {}]
  %s9 = inlined_call_operand.vmem [shape: f32[1,8], index: 9, kind: input, shape index: {}]
  %s10 = inlined_call_operand.vmem [shape: f32[1,8], index: 10, kind: input, shape index: {}]
  %s11 = inlined_call_operand.vmem [shape: f32[256,8], index: 11, kind: input, shape index: {}]
  %s12 = inlined_call_operand.vmem [shape: f32[8,256], index: 12, kind: input, shape index: {}]
  %s13 = inlined_call_operand.hbm [shape: f32[8,256], index: 13, kind: output, shape index: {}]
  %s14 = sld [smem:[#allocation0]]
  $region62: #{tpu_custom_call.1} parent=0
    _
  %s16 = ssub.s32 1, %s14
  %s17 = scalar_select 0, %s16, %s14
  $region1: #{tpu_custom_call.1} parent=0
    #allocation2 [shape = 'u8[8192]{0}', space=vmem, size = 0x2000, scoped, tag = 'output window, operand 0, single buffered']
    #allocation3 [shape = 's32[1]{0}', space=sflag, size = 0x4, scoped, tag = 'scoped memory for tpu_custom_call.1']
    %18 = vsyncpa [#allocation3], 0
    // Predicated region
    $region2: #{tpu_custom_call.1} parent=1 // pred_check
      _
    $region3: #{tpu_custom_call.1} parent=1 // pred_check_branch
      %20 = sbr.rel (0) target = $region5
    $region4: #{tpu_custom_call.1} parent=1 // pred_region
      _
    $region5: #{tpu_custom_call.1} parent=1 // pred_fallthru
      _
    // Predicated region
    $region6: #{tpu_custom_call.1} parent=1 // pred_check
      _
    $region7: #{tpu_custom_call.1} parent=1 // pred_check_branch
      %22 = sbr.rel (0) target = $region9
    $region8: #{tpu_custom_call.1} parent=1 // pred_region
      _
    $region9: #{tpu_custom_call.1} parent=1 // pred_fallthru
      _
    // Predicated region
    $region10: #{tpu_custom_call.1} parent=1 // pred_check
      _
    $region11: #{tpu_custom_call.1} parent=1 // pred_check_branch
      %24 = sbr.rel (0) target = $region13
    $region12: #{tpu_custom_call.1} parent=1 // pred_region
      _
    $region13: #{tpu_custom_call.1} parent=1 // pred_fallthru
      _
    // Predicated region
    $region14: #{tpu_custom_call.1} parent=1 // pred_check
      _
    $region15: #{tpu_custom_call.1} parent=1 // pred_check_branch
      %26 = sbr.rel (0) target = $region17
    $region16: #{tpu_custom_call.1} parent=1 // pred_region
      _
    $region17: #{tpu_custom_call.1} parent=1 // pred_fallthru
      _
    // Predicated region
    $region18: #{tpu_custom_call.1} parent=1 // pred_check
      _
    $region19: #{tpu_custom_call.1} parent=1 // pred_check_branch
      %28 = sbr.rel (0) target = $region21
    $region20: #{tpu_custom_call.1} parent=1 // pred_region
      _
    $region21: #{tpu_custom_call.1} parent=1 // pred_fallthru
      _
    // Predicated region
    $region22: #{tpu_custom_call.1} parent=1 // pred_check
      _
    $region23: #{tpu_custom_call.1} parent=1 // pred_check_branch
      %30 = sbr.rel (0) target = $region25
    $region24: #{tpu_custom_call.1} parent=1 // pred_region
      _
    $region25: #{tpu_custom_call.1} parent=1 // pred_fallthru
      _
    // Predicated region
    $region26: #{tpu_custom_call.1} parent=1 // pred_check
      _
    $region27: #{tpu_custom_call.1} parent=1 // pred_check_branch
      %32 = sbr.rel (0) target = $region29
    $region28: #{tpu_custom_call.1} parent=1 // pred_region
      _
    $region29: #{tpu_custom_call.1} parent=1 // pred_fallthru
      _
    // Predicated region
    $region30: #{tpu_custom_call.1} parent=1 // pred_check
      _
    $region31: #{tpu_custom_call.1} parent=1 // pred_check_branch
      %34 = sbr.rel (0) target = $region33
    $region32: #{tpu_custom_call.1} parent=1 // pred_region
      _
    $region33: #{tpu_custom_call.1} parent=1 // pred_fallthru
      _
    // Predicated region
    $region34: #{tpu_custom_call.1} parent=1 // pred_check
      _
    $region35: #{tpu_custom_call.1} parent=1 // pred_check_branch
      %36 = sbr.rel (0) target = $region37
    $region36: #{tpu_custom_call.1} parent=1 // pred_region
      _
    $region37: #{tpu_custom_call.1} parent=1 // pred_fallthru
      _
    // Predicated region
    $region38: #{tpu_custom_call.1} parent=1 // pred_check
      _
    $region39: #{tpu_custom_call.1} parent=1 // pred_check_branch
      %38 = sbr.rel (0) target = $region41
    $region40: #{tpu_custom_call.1} parent=1 // pred_region
      _
    $region41: #{tpu_custom_call.1} parent=1 // pred_fallthru
      _
    // Predicated region
    $region42: #{tpu_custom_call.1} parent=1 // pred_check
      _
    $region43: #{tpu_custom_call.1} parent=1 // pred_check_branch
      %40 = sbr.rel (0) target = $region45
    $region44: #{tpu_custom_call.1} parent=1 // pred_region
      _
    $region45: #{tpu_custom_call.1} parent=1 // pred_fallthru
      _
    // Predicated region
    $region46: #{tpu_custom_call.1} parent=1 // pred_check
      _
    $region47: #{tpu_custom_call.1} parent=1 // pred_check_branch
      %42 = sbr.rel (0) target = $region49
    $region48: #{tpu_custom_call.1} parent=1 // pred_region
      _
    $region49: #{tpu_custom_call.1} parent=1 // pred_fallthru
      _
    // Predicated region
    $region50: #{tpu_custom_call.1} parent=1 // pred_check
      _
    $region51: #{tpu_custom_call.1} parent=1 // pred_check_branch
      %44 = sbr.rel (0) target = $region53
    $region52: #{tpu_custom_call.1} parent=1 // pred_region
      _
    $region53: #{tpu_custom_call.1} parent=1 // pred_fallthru
      _
    %v46 = vld [vmem:[%s0] sm:$0xf]
    %v47 = vld [vmem:[%s1] sm:$0xf]
    %v48 = vld [vmem:[%s2] sm:$0x1]
    %v50 = vlaneseq
    %v51 = vshrl.u32 %v50, 7
    %v52 = vsub.s32 0, %v51
    %v53 = vrot.slane %v48, %v52
    %vm55 = vcmask 64512
    %v57 = vsel %vm55, %v46, 0
    %vm59 = vcmask 1043456
    %v61 = vsel %vm59, %v47, 0
    %63 = vmatprep.subr.bf16.mxu0 0
    %64 = vmatpush1.bf16.msra.mxu0 %v61
    %65 = vmatprep.subr.bf16.mxu0 0
    %66 = vmatpush1.bf16.msra.mxu0 0
    %67 = vmatprep.subr.bf16.mxu0 0
    %68 = vmatpush1.bf16.msra.mxu0 0
    %69 = vmatprep.subr.bf16.mxu0 0
    %70 = vmatpush1.bf16.msra.mxu0 0
    %71 = vmatprep.subr.bf16.mxu0 0
    %72 = vmatpush1.bf16.msra.mxu0 0
    %73 = vmatprep.subr.bf16.mxu0 0
    %74 = vmatpush1.bf16.msra.mxu0 0
    %75 = vmatprep.subr.bf16.mxu0 0
    %76 = vmatpush1.bf16.msra.mxu0 0
    %77 = vmatprep.subr.bf16.mxu0 0
    %78 = vmatpush1.bf16.msra.mxu0 0
    %79 = vmatprep.subr.bf16.mxu0 0
    %80 = vmatpush1.bf16.msra.mxu0 0
    %81 = vmatprep.subr.bf16.mxu0 0
    %82 = vmatpush1.bf16.msra.mxu0 0
    %83 = vmatprep.subr.bf16.mxu0 0
    %84 = vmatpush1.bf16.msra.mxu0 0
    %85 = vmatprep.subr.bf16.mxu0 0
    %86 = vmatpush1.bf16.msra.mxu0 0
    %87 = vmatprep.subr.bf16.mxu0 0
    %88 = vmatpush1.bf16.msra.mxu0 0
    %89 = vmatprep.subr.bf16.mxu0 0
    %90 = vmatpush1.bf16.msra.mxu0 0
    %91 = vmatprep.subr.bf16.mxu0 0
    %92 = vmatpush1.bf16.msra.mxu0 0
    %93 = vmatprep.subr.bf16.mxu0 0
    %94 = vmatpush1.bf16.msra.mxu0 0
    %95 = vmatprep.mubr.bf16.mxu0 0
    %96 = vmatmul.mubr.bf16.gmra.mrb[0].mxu0 %v57
    %v97 = vpop.f32.mrb[0].mxu0
    %v98 = vadd.f32 %v53, %v97
    %v99 = vpop.f32.mrb[0].mxu0
    %v100 = vpop.f32.mrb[0].mxu0
    %v101 = vpop.f32.mrb[0].mxu0
    %102 = vdwg.mxu0
    %v103 = vmax.f32 %v98, 0.0
    %v104 = vpack.c.bf16 %v103, %v103
    %v105 = vld [vmem:[%s3] sm:$0xf]
    %v106 = vld [vmem:[%s3 + $0x4] sm:$0xf]
    %v107 = vld [vmem:[%s3 + $0x8] sm:$0xf]
    %v108 = vld [vmem:[%s3 + $0xc] sm:$0xf]
    %v109 = vld [vmem:[%s3 + $0x10] sm:$0xf]
    %v110 = vld [vmem:[%s3 + $0x14] sm:$0xf]
    %v111 = vld [vmem:[%s3 + $0x18] sm:$0xf]
    %v112 = vld [vmem:[%s3 + $0x1c] sm:$0xf]
    %v113 = vld [vmem:[%s3 + $0x20] sm:$0xf]
    %v114 = vld [vmem:[%s3 + $0x24] sm:$0xf]
    %v115 = vld [vmem:[%s3 + $0x28] sm:$0xf]
    %v116 = vld [vmem:[%s3 + $0x2c] sm:$0xf]
    %v117 = vld [vmem:[%s3 + $0x30] sm:$0xf]
    %v118 = vld [vmem:[%s3 + $0x34] sm:$0xf]
    %v119 = vld [vmem:[%s3 + $0x38] sm:$0xf]
    %v120 = vld [vmem:[%s3 + $0x3c] sm:$0xf]
    %v137 = vunpack.c.l.b16 %v105
    %v138 = vunpack.c.l.b16 %v106
    %v139 = vunpack.c.l.b16 %v107
    %v140 = vunpack.c.l.b16 %v108
    %v141 = vunpack.c.l.b16 %v109
    %v142 = vunpack.c.l.b16 %v110
    %v143 = vunpack.c.l.b16 %v111
    %v144 = vunpack.c.l.b16 %v112
    %v145 = vunpack.c.l.b16 %v113
    %v146 = vunpack.c.l.b16 %v114
    %v147 = vunpack.c.l.b16 %v115
    %v148 = vunpack.c.l.b16 %v116
    %v149 = vunpack.c.l.b16 %v117
    %v150 = vunpack.c.l.b16 %v118
    %v151 = vunpack.c.l.b16 %v119
    %v152 = vunpack.c.l.b16 %v120
    %v153 = vpack.c.b16 %v138, %v137
    %v154 = vpack.c.b16 %v140, %v139
    %v155 = vpack.c.b16 %v142, %v141
    %v156 = vpack.c.b16 %v144, %v143
    %v157 = vpack.c.b16 %v146, %v145
    %v158 = vpack.c.b16 %v148, %v147
    %v159 = vpack.c.b16 %v150, %v149
    %v160 = vpack.c.b16 %v152, %v151
    %169 = vmatprep.subr.bf16.mxu0 0
    %170 = vmatpush1.bf16.msra.mxu0 %v153
    %171 = vmatprep.subr.bf16.mxu0 0
    %172 = vmatpush1.bf16.msra.mxu0 %v154
    %173 = vmatprep.subr.bf16.mxu0 0
    %174 = vmatpush1.bf16.msra.mxu0 %v155
    %175 = vmatprep.subr.bf16.mxu0 0
    %176 = vmatpush1.bf16.msra.mxu0 %v156
    %177 = vmatprep.subr.bf16.mxu0 0
    %178 = vmatpush1.bf16.msra.mxu0 %v157
    %179 = vmatprep.subr.bf16.mxu0 0
    %180 = vmatpush1.bf16.msra.mxu0 %v158
    %181 = vmatprep.subr.bf16.mxu0 0
    %182 = vmatpush1.bf16.msra.mxu0 %v159
    %183 = vmatprep.subr.bf16.mxu0 0
    %184 = vmatpush1.bf16.msra.mxu0 %v160
    %185 = vmatprep.subr.bf16.mxu0 0
    %186 = vmatpush1.bf16.msra.mxu0 0
    %187 = vmatprep.subr.bf16.mxu0 0
    %188 = vmatpush1.bf16.msra.mxu0 0
    %189 = vmatprep.subr.bf16.mxu0 0
    %190 = vmatpush1.bf16.msra.mxu0 0
    %191 = vmatprep.subr.bf16.mxu0 0
    %192 = vmatpush1.bf16.msra.mxu0 0
    %193 = vmatprep.subr.bf16.mxu0 0
    %194 = vmatpush1.bf16.msra.mxu0 0
    %195 = vmatprep.subr.bf16.mxu0 0
    %196 = vmatpush1.bf16.msra.mxu0 0
    %197 = vmatprep.subr.bf16.mxu0 0
    %198 = vmatpush1.bf16.msra.mxu0 0
    %199 = vmatprep.subr.bf16.mxu0 0
    %200 = vmatpush1.bf16.msra.mxu0 0
    %201 = vmatprep.mubr.bf16.mxu0 0
    %202 = vmatmul.mubr.bf16.gmra.mrb[0].mxu0 %v104
    %v203 = vpop.f32.mrb[0].mxu0
    %v204 = vadd.f32 0.0, %v203
    %v205 = vpop.f32.mrb[0].mxu0
    %v206 = vpop.f32.mrb[0].mxu0
    %v207 = vpop.f32.mrb[0].mxu0
    %208 = vdwg.mxu0
    %v209 = vld [vmem:[%s4] sm:$0x1]
    %v210 = vld [vmem:[%s5] sm:$0x1]
    %v211 = vld [vmem:[%s6] sm:$0xff]
    %v212 = vld [vmem:[%s6 + $0x8] sm:$0xff]
    %v213 = vld [vmem:[%s6 + $0x10] sm:$0xff]
    %v214 = vld [vmem:[%s6 + $0x18] sm:$0xff]
    %v215 = vld [vmem:[%s6 + $0x20] sm:$0xff]
    %v216 = vld [vmem:[%s6 + $0x28] sm:$0xff]
    %v217 = vld [vmem:[%s6 + $0x30] sm:$0xff]
    %v218 = vld [vmem:[%s6 + $0x38] sm:$0xff]
    %v219 = vld [vmem:[%s6 + $0x40] sm:$0xff]
    %v220 = vld [vmem:[%s6 + $0x48] sm:$0xff]
    %v221 = vld [vmem:[%s6 + $0x50] sm:$0xff]
    %v222 = vld [vmem:[%s6 + $0x58] sm:$0xff]
    %v223 = vld [vmem:[%s6 + $0x60] sm:$0xff]
    %v224 = vld [vmem:[%s6 + $0x68] sm:$0xff]
    %v225 = vld [vmem:[%s6 + $0x70] sm:$0xff]
    %v226 = vld [vmem:[%s6 + $0x78] sm:$0xff]
    %v227 = vld [vmem:[%s7] sm:$0xff]
    %v228 = vmul.f32 %v204, %v204
    %229 = vmatprep.subr.mxu0 0.0
    %230 = vmatpush1.msra.mxu0 %v211
    %231 = vmatprep.subr.mxu0 0.0
    %232 = vmatpush1.msra.mxu0 %v212
    %233 = vmatprep.subr.mxu0 0.0
    %234 = vmatpush1.msra.mxu0 %v213
    %235 = vmatprep.subr.mxu0 0.0
    %236 = vmatpush1.msra.mxu0 %v214
    %237 = vmatprep.subr.mxu0 0.0
    %238 = vmatpush1.msra.mxu0 %v215
    %239 = vmatprep.subr.mxu0 0.0
    %240 = vmatpush1.msra.mxu0 %v216
    %241 = vmatprep.subr.mxu0 0.0
    %242 = vmatpush1.msra.mxu0 %v217
    %243 = vmatprep.subr.mxu0 0.0
    %244 = vmatpush1.msra.mxu0 %v218
    %245 = vmatprep.subr.mxu0 0.0
    %246 = vmatpush1.msra.mxu0 %v219
    %247 = vmatprep.subr.mxu0 0.0
    %248 = vmatpush1.msra.mxu0 %v220
    %249 = vmatprep.subr.mxu0 0.0
    %250 = vmatpush1.msra.mxu0 %v221
    %251 = vmatprep.subr.mxu0 0.0
    %252 = vmatpush1.msra.mxu0 %v222
    %253 = vmatprep.subr.mxu0 0.0
    %254 = vmatpush1.msra.mxu0 %v223
    %255 = vmatprep.subr.mxu0 0.0
    %256 = vmatpush1.msra.mxu0 %v224
    %257 = vmatprep.subr.mxu0 0.0
    %258 = vmatpush1.msra.mxu0 %v225
    %259 = vmatprep.subr.mxu0 0.0
    %260 = vmatpush1.msra.mxu0 %v226
    %261 = vmatprep.subr.mxu0 0.0
    %262 = vmatpush1.msra.mxu0 0.0
    %263 = vmatprep.subr.mxu0 0.0
    %264 = vmatpush1.msra.mxu0 0.0
    %265 = vmatprep.subr.mxu0 0.0
    %266 = vmatpush1.msra.mxu0 0.0
    %267 = vmatprep.subr.mxu0 0.0
    %268 = vmatpush1.msra.mxu0 0.0
    %269 = vmatprep.subr.mxu0 0.0
    %270 = vmatpush1.msra.mxu0 0.0
    %271 = vmatprep.subr.mxu0 0.0
    %272 = vmatpush1.msra.mxu0 0.0
    %273 = vmatprep.subr.mxu0 0.0
    %274 = vmatpush1.msra.mxu0 0.0
    %275 = vmatprep.subr.mxu0 0.0
    %276 = vmatpush1.msra.mxu0 0.0
    %277 = vmatprep.subr.mxu0 0.0
    %278 = vmatpush1.msra.mxu0 0.0
    %279 = vmatprep.subr.mxu0 0.0
    %280 = vmatpush1.msra.mxu0 0.0
    %281 = vmatprep.subr.mxu0 0.0
    %282 = vmatpush1.msra.mxu0 0.0
    %283 = vmatprep.subr.mxu0 0.0
    %284 = vmatpush1.msra.mxu0 0.0
    %285 = vmatprep.subr.mxu0 0.0
    %286 = vmatpush1.msra.mxu0 0.0
    %287 = vmatprep.subr.mxu0 0.0
    %288 = vmatpush1.msra.mxu0 0.0
    %289 = vmatprep.subr.mxu0 0.0
    %290 = vmatpush1.msra.mxu0 0.0
    %291 = vmatprep.subr.mxu0 0.0
    %292 = vmatpush1.msra.mxu0 0.0
    %293 = vmatprep.mubr.f32.mxu0 0.0
    %294 = vmatmul.mubr.f32.gmra.mrb[0].mxu0 %v204
    %v295 = vpop.f32.mrb[0].mxu0
    %v296 = vadd.f32 0.0, %v295
    %v297 = vpop.f32.mrb[0].mxu0
    %298 = vmatprep.mubr.f32.mxu0 0.0
    %299 = vmatmul.mubr.f32.gmra.mrb[0].mxu0 %v228
    %v300 = vpop.f32.mrb[0].mxu0
    %v301 = vadd.f32 0.0, %v300
    %v302 = vpop.f32.mrb[0].mxu0
    %303 = vdwg.mxu0
    %vm304 = vcmask 58368
    %v305 = vsel %vm304, %v296, 0.0
    %v306 = vrot.slane %v305, 4
    %v307 = vadd.f32 %v305, %v306
    %v308 = vrot.slane %v307, 2
    %v309 = vadd.f32 %v307, %v308
    %v310 = vrot.slane %v309, 1
    %v311 = vadd.f32 %v309, %v310
    %v312 = vsel %vm304, %v301, 0.0
    %v313 = vrot.slane %v312, 4
    %v314 = vadd.f32 %v312, %v313
    %v315 = vrot.slane %v314, 2
    %v316 = vadd.f32 %v314, %v315
    %v317 = vrot.slane %v316, 1
    %v318 = vadd.f32 %v316, %v317
    %v319 = vmul.f32 %v311, 0.010204081
    %v320 = vmul.f32 %v318, 0.010204081
    %v321 = vmul.f32 %v319, %v319
    %v322 = vsub.f32 %v320, %v321
    %v323 = vmax.f32 %v322, 0.0
    %v324 = vadd.f32 %v323, 1e-05
    %v325 = vrsqrt.pop %v324
    %v326 = vmul.f32 %v209, %v325
    %v327 = vmul.f32 %v319, %v326
    %v328 = vsub.f32 %v210, %v327
    %v330 = vlaneseq
    %v331 = vshrl.u32 %v330, 7
    %v332 = vsub.s32 0, %v331
    %v333 = vrot.slane %v328, %v332
    %vm335 = vcmask 1040384
    %v336 = vsel %vm335, %v326, %v333
    %v338 = vsel %vm55, %v336, 0
    %340 = vmatprep.subr.mxu0 0.0
    %341 = vmatpush1.msra.mxu0 %v227
    %342 = vmatprep.subr.mxu0 0.0
    %343 = vmatpush1.msra.mxu0 0.0
    %344 = vmatprep.subr.mxu0 0.0
    %345 = vmatpush1.msra.mxu0 0.0
    %346 = vmatprep.subr.mxu0 0.0
    %347 = vmatpush1.msra.mxu0 0.0
    %348 = vmatprep.subr.mxu0 0.0
    %349 = vmatpush1.msra.mxu0 0.0
    %350 = vmatprep.subr.mxu0 0.0
    %351 = vmatpush1.msra.mxu0 0.0
    %352 = vmatprep.subr.mxu0 0.0
    %353 = vmatpush1.msra.mxu0 0.0
    %354 = vmatprep.subr.mxu0 0.0
    %355 = vmatpush1.msra.mxu0 0.0
    %356 = vmatprep.subr.mxu0 0.0
    %357 = vmatpush1.msra.mxu0 0.0
    %358 = vmatprep.subr.mxu0 0.0
    %359 = vmatpush1.msra.mxu0 0.0
    %360 = vmatprep.subr.mxu0 0.0
    %361 = vmatpush1.msra.mxu0 0.0
    %362 = vmatprep.subr.mxu0 0.0
    %363 = vmatpush1.msra.mxu0 0.0
    %364 = vmatprep.subr.mxu0 0.0
    %365 = vmatpush1.msra.mxu0 0.0
    %366 = vmatprep.subr.mxu0 0.0
    %367 = vmatpush1.msra.mxu0 0.0
    %368 = vmatprep.subr.mxu0 0.0
    %369 = vmatpush1.msra.mxu0 0.0
    %370 = vmatprep.subr.mxu0 0.0
    %371 = vmatpush1.msra.mxu0 0.0
    %372 = vmatprep.subr.mxu0 0.0
    %373 = vmatpush1.msra.mxu0 0.0
    %374 = vmatprep.subr.mxu0 0.0
    %375 = vmatpush1.msra.mxu0 0.0
    %376 = vmatprep.subr.mxu0 0.0
    %377 = vmatpush1.msra.mxu0 0.0
    %378 = vmatprep.subr.mxu0 0.0
    %379 = vmatpush1.msra.mxu0 0.0
    %380 = vmatprep.subr.mxu0 0.0
    %381 = vmatpush1.msra.mxu0 0.0
    %382 = vmatprep.subr.mxu0 0.0
    %383 = vmatpush1.msra.mxu0 0.0
    %384 = vmatprep.subr.mxu0 0.0
    %385 = vmatpush1.msra.mxu0 0.0
    %386 = vmatprep.subr.mxu0 0.0
    %387 = vmatpush1.msra.mxu0 0.0
    %388 = vmatprep.subr.mxu0 0.0
    %389 = vmatpush1.msra.mxu0 0.0
    %390 = vmatprep.subr.mxu0 0.0
    %391 = vmatpush1.msra.mxu0 0.0
    %392 = vmatprep.subr.mxu0 0.0
    %393 = vmatpush1.msra.mxu0 0.0
    %394 = vmatprep.subr.mxu0 0.0
    %395 = vmatpush1.msra.mxu0 0.0
    %396 = vmatprep.subr.mxu0 0.0
    %397 = vmatpush1.msra.mxu0 0.0
    %398 = vmatprep.subr.mxu0 0.0
    %399 = vmatpush1.msra.mxu0 0.0
    %400 = vmatprep.subr.mxu0 0.0
    %401 = vmatpush1.msra.mxu0 0.0
    %402 = vmatprep.subr.mxu0 0.0
    %403 = vmatpush1.msra.mxu0 0.0
    %404 = vmatprep.mubr.f32.mxu0 0.0
    %405 = vmatmul.mubr.f32.gmra.mrb[0].mxu0 %v338
    %v406 = vpop.f32.mrb[0].mxu0
    %v407 = vadd.f32 0.0, %v406
    %v408 = vpop.f32.mrb[0].mxu0
    %409 = vdwg.mxu0
    %v410 = vlaneseq
    %v411 = vshrl.u32 %v410, 7
    %v412 = vsub.s32 0, %v411
    %v413 = vrot.slane %v407, %v412
    %v414 = vmul.f32 %v204, %v413
    %v415 = vlaneseq
    %v416 = vshrl.u32 %v415, 7
    %v417 = vsub.s32 1, %v416
    %v418 = vrot.slane %v407, %v417
    %v419 = vadd.f32 %v414, %v418
    %vm420 = vcmp.gt.f32.partialorder %v419, 0.0
    %v421 = vmin.f32 %v419, 0.0
    %v422 = vmul.f32 %v421, 1.442695
    %v423 = vpow.pop %v422
    %v424 = vsub.f32 %v423, 1.0
    %v425 = vsel %vm420, %v419, %v424
    %v426 = vpack.c.bf16 %v425, %v425
    %v427 = vld [vmem:[%s8] sm:$0xff]
    %v428 = vld [vmem:[%s8 + $0x8] sm:$0xff]
    %v429 = vld [vmem:[%s8 + $0x10] sm:$0xff]
    %v430 = vld [vmem:[%s8 + $0x18] sm:$0xff]
    %v431 = vld [vmem:[%s8 + $0x20] sm:$0xff]
    %v432 = vld [vmem:[%s8 + $0x28] sm:$0xff]
    %v433 = vld [vmem:[%s8 + $0x30] sm:$0xff]
    %v434 = vld [vmem:[%s8 + $0x38] sm:$0xff]
    %v435 = vld [vmem:[%s8 + $0x40] sm:$0xff]
    %v436 = vld [vmem:[%s8 + $0x48] sm:$0xff]
    %v437 = vld [vmem:[%s8 + $0x50] sm:$0xff]
    %v438 = vld [vmem:[%s8 + $0x58] sm:$0xff]
    %v439 = vld [vmem:[%s8 + $0x60] sm:$0xff]
    %v440 = vld [vmem:[%s8 + $0x68] sm:$0xff]
    %v441 = vld [vmem:[%s8 + $0x70] sm:$0xff]
    %v442 = vld [vmem:[%s8 + $0x78] sm:$0xff]
    %v459 = vunpack.c.l.b16 %v427
    %v460 = vunpack.c.h.b16 %v427
    %v461 = vunpack.c.l.b16 %v428
    %v462 = vunpack.c.h.b16 %v428
    %v463 = vunpack.c.l.b16 %v429
    %v464 = vunpack.c.h.b16 %v429
    %v465 = vunpack.c.l.b16 %v430
    %v466 = vunpack.c.h.b16 %v430
    %v467 = vunpack.c.l.b16 %v431
    %v468 = vunpack.c.h.b16 %v431
    %v469 = vunpack.c.l.b16 %v432
    %v470 = vunpack.c.h.b16 %v432
    %v471 = vunpack.c.l.b16 %v433
    %v472 = vunpack.c.h.b16 %v433
    %v473 = vunpack.c.l.b16 %v434
    %v474 = vunpack.c.h.b16 %v434
    %v475 = vunpack.c.l.b16 %v435
    %v476 = vunpack.c.h.b16 %v435
    %v477 = vunpack.c.l.b16 %v436
    %v478 = vunpack.c.h.b16 %v436
    %v479 = vunpack.c.l.b16 %v437
    %v480 = vunpack.c.h.b16 %v437
    %v481 = vunpack.c.l.b16 %v438
    %v482 = vunpack.c.h.b16 %v438
    %v483 = vunpack.c.l.b16 %v439
    %v484 = vunpack.c.h.b16 %v439
    %v485 = vunpack.c.l.b16 %v440
    %v486 = vunpack.c.h.b16 %v440
    %v487 = vunpack.c.l.b16 %v441
    %v488 = vunpack.c.h.b16 %v441
    %v489 = vunpack.c.l.b16 %v442
    %v490 = vunpack.c.h.b16 %v442
    %v491 = vpack.c.b16 %v461, %v459
    %v492 = vpack.c.b16 %v462, %v460
    %v493 = vpack.c.b16 %v465, %v463
    %v494 = vpack.c.b16 %v466, %v464
    %v495 = vpack.c.b16 %v469, %v467
    %v496 = vpack.c.b16 %v470, %v468
    %v497 = vpack.c.b16 %v473, %v471
    %v498 = vpack.c.b16 %v474, %v472
    %v499 = vpack.c.b16 %v477, %v475
    %v500 = vpack.c.b16 %v478, %v476
    %v501 = vpack.c.b16 %v481, %v479
    %v502 = vpack.c.b16 %v482, %v480
    %v503 = vpack.c.b16 %v485, %v483
    %v504 = vpack.c.b16 %v486, %v484
    %v505 = vpack.c.b16 %v489, %v487
    %v506 = vpack.c.b16 %v490, %v488
    %523 = vmatprep.subr.bf16.mxu0 %v492
    %524 = vmatpush1.bf16.msra.mxu0 %v491
    %525 = vmatprep.subr.bf16.mxu0 %v494
    %526 = vmatpush1.bf16.msra.mxu0 %v493
    %527 = vmatprep.subr.bf16.mxu0 %v496
    %528 = vmatpush1.bf16.msra.mxu0 %v495
    %529 = vmatprep.subr.bf16.mxu0 %v498
    %530 = vmatpush1.bf16.msra.mxu0 %v497
    %531 = vmatprep.subr.bf16.mxu0 %v500
    %532 = vmatpush1.bf16.msra.mxu0 %v499
    %533 = vmatprep.subr.bf16.mxu0 %v502
    %534 = vmatpush1.bf16.msra.mxu0 %v501
    %535 = vmatprep.subr.bf16.mxu0 %v504
    %536 = vmatpush1.bf16.msra.mxu0 %v503
    %537 = vmatprep.subr.bf16.mxu0 %v506
    %538 = vmatpush1.bf16.msra.mxu0 %v505
    %539 = vmatprep.subr.bf16.mxu0 0
    %540 = vmatpush1.bf16.msra.mxu0 0
    %541 = vmatprep.subr.bf16.mxu0 0
    %542 = vmatpush1.bf16.msra.mxu0 0
    %543 = vmatprep.subr.bf16.mxu0 0
    %544 = vmatpush1.bf16.msra.mxu0 0
    %545 = vmatprep.subr.bf16.mxu0 0
    %546 = vmatpush1.bf16.msra.mxu0 0
    %547 = vmatprep.subr.bf16.mxu0 0
    %548 = vmatpush1.bf16.msra.mxu0 0
    %549 = vmatprep.subr.bf16.mxu0 0
    %550 = vmatpush1.bf16.msra.mxu0 0
    %551 = vmatprep.subr.bf16.mxu0 0
    %552 = vmatpush1.bf16.msra.mxu0 0
    %553 = vmatprep.subr.bf16.mxu0 0
    %554 = vmatpush1.bf16.msra.mxu0 0
    %555 = vmatprep.mubr.bf16.mxu0 0
    %556 = vmatmul.mubr.bf16.gmra.mrb[0].mxu0 %v426
    %v557 = vpop.f32.mrb[0].mxu0
    %v558 = vadd.f32 0.0, %v557
    %v559 = vpop.f32.mrb[0].mxu0
    %v560 = vadd.f32 0.0, %v559
    %v561 = vpop.f32.mrb[0].mxu0
    %v562 = vpop.f32.mrb[0].mxu0
    %563 = vdwg.mxu0
    %v564 = vld [vmem:[%s9] sm:$0x1]
    %v565 = vld [vmem:[%s10] sm:$0x1]
    %v566 = vld [vmem:[%s11] sm:$0xff]
    %v567 = vld [vmem:[%s11 + $0x8] sm:$0xff]
    %v568 = vld [vmem:[%s11 + $0x10] sm:$0xff]
    %v569 = vld [vmem:[%s11 + $0x18] sm:$0xff]
    %v570 = vld [vmem:[%s11 + $0x20] sm:$0xff]
    %v571 = vld [vmem:[%s11 + $0x28] sm:$0xff]
    %v572 = vld [vmem:[%s11 + $0x30] sm:$0xff]
    %v573 = vld [vmem:[%s11 + $0x38] sm:$0xff]
    %v574 = vld [vmem:[%s11 + $0x40] sm:$0xff]
    %v575 = vld [vmem:[%s11 + $0x48] sm:$0xff]
    %v576 = vld [vmem:[%s11 + $0x50] sm:$0xff]
    %v577 = vld [vmem:[%s11 + $0x58] sm:$0xff]
    %v578 = vld [vmem:[%s11 + $0x60] sm:$0xff]
    %v579 = vld [vmem:[%s11 + $0x68] sm:$0xff]
    %v580 = vld [vmem:[%s11 + $0x70] sm:$0xff]
    %v581 = vld [vmem:[%s11 + $0x78] sm:$0xff]
    %v582 = vld [vmem:[%s11 + $0x80] sm:$0xff]
    %v583 = vld [vmem:[%s11 + $0x88] sm:$0xff]
    %v584 = vld [vmem:[%s11 + $0x90] sm:$0xff]
    %v585 = vld [vmem:[%s11 + $0x98] sm:$0xff]
    %v586 = vld [vmem:[%s11 + $0xa0] sm:$0xff]
    %v587 = vld [vmem:[%s11 + $0xa8] sm:$0xff]
    %v588 = vld [vmem:[%s11 + $0xb0] sm:$0xff]
    %v589 = vld [vmem:[%s11 + $0xb8] sm:$0xff]
    %v590 = vld [vmem:[%s11 + $0xc0] sm:$0xff]
    %v591 = vld [vmem:[%s11 + $0xc8] sm:$0xff]
    %v592 = vld [vmem:[%s11 + $0xd0] sm:$0xff]
    %v593 = vld [vmem:[%s11 + $0xd8] sm:$0xff]
    %v594 = vld [vmem:[%s11 + $0xe0] sm:$0xff]
    %v595 = vld [vmem:[%s11 + $0xe8] sm:$0xff]
    %v596 = vld [vmem:[%s11 + $0xf0] sm:$0xff]
    %v597 = vld [vmem:[%s11 + $0xf8] sm:$0xff]
    %v598 = vld [vmem:[%s12] sm:$0xff]
    %v599 = vld [vmem:[%s12 + $0x8] sm:$0xff]
    %v600 = vmul.f32 %v558, %v558
    %v601 = vmul.f32 %v560, %v560
    %602 = vmatprep.subr.mxu0 0.0
    %603 = vmatpush1.msra.mxu0 %v566
    %604 = vmatprep.subr.mxu0 0.0
    %605 = vmatpush1.msra.mxu0 %v567
    %606 = vmatprep.subr.mxu0 0.0
    %607 = vmatpush1.msra.mxu0 %v568
    %608 = vmatprep.subr.mxu0 0.0
    %609 = vmatpush1.msra.mxu0 %v569
    %610 = vmatprep.subr.mxu0 0.0
    %611 = vmatpush1.msra.mxu0 %v570
    %612 = vmatprep.subr.mxu0 0.0
    %613 = vmatpush1.msra.mxu0 %v571
    %614 = vmatprep.subr.mxu0 0.0
    %615 = vmatpush1.msra.mxu0 %v572
    %616 = vmatprep.subr.mxu0 0.0
    %617 = vmatpush1.msra.mxu0 %v573
    %618 = vmatprep.subr.mxu0 0.0
    %619 = vmatpush1.msra.mxu0 %v574
    %620 = vmatprep.subr.mxu0 0.0
    %621 = vmatpush1.msra.mxu0 %v575
    %622 = vmatprep.subr.mxu0 0.0
    %623 = vmatpush1.msra.mxu0 %v576
    %624 = vmatprep.subr.mxu0 0.0
    %625 = vmatpush1.msra.mxu0 %v577
    %626 = vmatprep.subr.mxu0 0.0
    %627 = vmatpush1.msra.mxu0 %v578
    %628 = vmatprep.subr.mxu0 0.0
    %629 = vmatpush1.msra.mxu0 %v579
    %630 = vmatprep.subr.mxu0 0.0
    %631 = vmatpush1.msra.mxu0 %v580
    %632 = vmatprep.subr.mxu0 0.0
    %633 = vmatpush1.msra.mxu0 %v581
    %634 = vmatprep.subr.mxu0 0.0
    %635 = vmatpush1.msra.mxu0 %v582
    %636 = vmatprep.subr.mxu0 0.0
    %637 = vmatpush1.msra.mxu0 %v583
    %638 = vmatprep.subr.mxu0 0.0
    %639 = vmatpush1.msra.mxu0 %v584
    %640 = vmatprep.subr.mxu0 0.0
    %641 = vmatpush1.msra.mxu0 %v585
    %642 = vmatprep.subr.mxu0 0.0
    %643 = vmatpush1.msra.mxu0 %v586
    %644 = vmatprep.subr.mxu0 0.0
    %645 = vmatpush1.msra.mxu0 %v587
    %646 = vmatprep.subr.mxu0 0.0
    %647 = vmatpush1.msra.mxu0 %v588
    %648 = vmatprep.subr.mxu0 0.0
    %649 = vmatpush1.msra.mxu0 %v589
    %650 = vmatprep.subr.mxu0 0.0
    %651 = vmatpush1.msra.mxu0 %v590
    %652 = vmatprep.subr.mxu0 0.0
    %653 = vmatpush1.msra.mxu0 %v591
    %654 = vmatprep.subr.mxu0 0.0
    %655 = vmatpush1.msra.mxu0 %v592
    %656 = vmatprep.subr.mxu0 0.0
    %657 = vmatpush1.msra.mxu0 %v593
    %658 = vmatprep.subr.mxu0 0.0
    %659 = vmatpush1.msra.mxu0 %v594
    %660 = vmatprep.subr.mxu0 0.0
    %661 = vmatpush1.msra.mxu0 %v595
    %662 = vmatprep.subr.mxu0 0.0
    %663 = vmatpush1.msra.mxu0 %v596
    %664 = vmatprep.subr.mxu0 0.0
    %665 = vmatpush1.msra.mxu0 %v597
    %666 = vmatprep.mubr.f32.mxu0 %v560
    %667 = vmatmul.mubr.f32.gmra.mrb[0].mxu0 %v558
    %v668 = vpop.f32.mrb[0].mxu0
    %v669 = vadd.f32 0.0, %v668
    %v670 = vpop.f32.mrb[0].mxu0
    %671 = vmatprep.mubr.f32.mxu0 %v601
    %672 = vmatmul.mubr.f32.gmra.mrb[0].mxu0 %v600
    %v673 = vpop.f32.mrb[0].mxu0
    %v674 = vadd.f32 0.0, %v673
    %v675 = vpop.f32.mrb[0].mxu0
    %676 = vdwg.mxu0
    %v677 = vsel %vm304, %v669, 0.0
    %v678 = vrot.slane %v677, 4
    %v679 = vadd.f32 %v677, %v678
    %v680 = vrot.slane %v679, 2
    %v681 = vadd.f32 %v679, %v680
    %v682 = vrot.slane %v681, 1
    %v683 = vadd.f32 %v681, %v682
    %v684 = vsel %vm304, %v674, 0.0
    %v685 = vrot.slane %v684, 4
    %v686 = vadd.f32 %v684, %v685
    %v687 = vrot.slane %v686, 2
    %v688 = vadd.f32 %v686, %v687
    %v689 = vrot.slane %v688, 1
    %v690 = vadd.f32 %v688, %v689
    %v691 = vmul.f32 %v683, 0.0025510204
    %v692 = vmul.f32 %v690, 0.0025510204
    %v693 = vmul.f32 %v691, %v691
    %v694 = vsub.f32 %v692, %v693
    %v695 = vmax.f32 %v694, 0.0
    %v696 = vadd.f32 %v695, 1e-05
    %v697 = vrsqrt.pop %v696
    %v698 = vmul.f32 %v564, %v697
    %v699 = vmul.f32 %v691, %v698
    %v700 = vsub.f32 %v565, %v699
    %v702 = vlaneseq
    %v703 = vshrl.u32 %v702, 7
    %v704 = vsub.s32 0, %v703
    %v705 = vrot.slane %v700, %v704
    %v707 = vsel %vm335, %v698, %v705
    %v709 = vsel %vm55, %v707, 0
    %711 = vmatprep.subr.mxu0 %v599
    %712 = vmatpush1.msra.mxu0 %v598
    %713 = vmatprep.subr.mxu0 0.0
    %714 = vmatpush1.msra.mxu0 0.0
    %715 = vmatprep.subr.mxu0 0.0
    %716 = vmatpush1.msra.mxu0 0.0
    %717 = vmatprep.subr.mxu0 0.0
    %718 = vmatpush1.msra.mxu0 0.0
    %719 = vmatprep.subr.mxu0 0.0
    %720 = vmatpush1.msra.mxu0 0.0
    %721 = vmatprep.subr.mxu0 0.0
    %722 = vmatpush1.msra.mxu0 0.0
    %723 = vmatprep.subr.mxu0 0.0
    %724 = vmatpush1.msra.mxu0 0.0
    %725 = vmatprep.subr.mxu0 0.0
    %726 = vmatpush1.msra.mxu0 0.0
    %727 = vmatprep.subr.mxu0 0.0
    %728 = vmatpush1.msra.mxu0 0.0
    %729 = vmatprep.subr.mxu0 0.0
    %730 = vmatpush1.msra.mxu0 0.0
    %731 = vmatprep.subr.mxu0 0.0
    %732 = vmatpush1.msra.mxu0 0.0
    %733 = vmatprep.subr.mxu0 0.0
    %734 = vmatpush1.msra.mxu0 0.0
    %735 = vmatprep.subr.mxu0 0.0
    %736 = vmatpush1.msra.mxu0 0.0
    %737 = vmatprep.subr.mxu0 0.0
    %738 = vmatpush1.msra.mxu0 0.0
    %739 = vmatprep.subr.mxu0 0.0
    %740 = vmatpush1.msra.mxu0 0.0
    %741 = vmatprep.subr.mxu0 0.0
    %742 = vmatpush1.msra.mxu0 0.0
    %743 = vmatprep.subr.mxu0 0.0
    %744 = vmatpush1.msra.mxu0 0.0
    %745 = vmatprep.subr.mxu0 0.0
    %746 = vmatpush1.msra.mxu0 0.0
    %747 = vmatprep.subr.mxu0 0.0
    %748 = vmatpush1.msra.mxu0 0.0
    %749 = vmatprep.subr.mxu0 0.0
    %750 = vmatpush1.msra.mxu0 0.0
    %751 = vmatprep.subr.mxu0 0.0
    %752 = vmatpush1.msra.mxu0 0.0
    %753 = vmatprep.subr.mxu0 0.0
    %754 = vmatpush1.msra.mxu0 0.0
    %755 = vmatprep.subr.mxu0 0.0
    %756 = vmatpush1.msra.mxu0 0.0
    %757 = vmatprep.subr.mxu0 0.0
    %758 = vmatpush1.msra.mxu0 0.0
    %759 = vmatprep.subr.mxu0 0.0
    %760 = vmatpush1.msra.mxu0 0.0
    %761 = vmatprep.subr.mxu0 0.0
    %762 = vmatpush1.msra.mxu0 0.0
    %763 = vmatprep.subr.mxu0 0.0
    %764 = vmatpush1.msra.mxu0 0.0
    %765 = vmatprep.subr.mxu0 0.0
    %766 = vmatpush1.msra.mxu0 0.0
    %767 = vmatprep.subr.mxu0 0.0
    %768 = vmatpush1.msra.mxu0 0.0
    %769 = vmatprep.subr.mxu0 0.0
    %770 = vmatpush1.msra.mxu0 0.0
    %771 = vmatprep.subr.mxu0 0.0
    %772 = vmatpush1.msra.mxu0 0.0
    %773 = vmatprep.subr.mxu0 0.0
    %774 = vmatpush1.msra.mxu0 0.0
    %775 = vmatprep.mubr.f32.mxu0 0.0
    %776 = vmatmul.mubr.f32.gmra.mrb[0].mxu0 %v709
    %v777 = vpop.f32.mrb[0].mxu0
    %v778 = vadd.f32 0.0, %v777
    %v779 = vpop.f32.mrb[0].mxu0
    %v780 = vadd.f32 0.0, %v779
    %781 = vdwg.mxu0
    %v782 = vlaneseq
    %v783 = vshrl.u32 %v782, 7
    %v784 = vsub.s32 0, %v783
    %v785 = vrot.slane %v778, %v784
    %v786 = vlaneseq
    %v787 = vshrl.u32 %v786, 7
    %v788 = vsub.s32 0, %v787
    %v789 = vrot.slane %v780, %v788
    %v790 = vmul.f32 %v558, %v785
    %v791 = vmul.f32 %v560, %v789
    %v792 = vlaneseq
    %v793 = vshrl.u32 %v792, 7
    %v794 = vsub.s32 1, %v793
    %v795 = vrot.slane %v778, %v794
    %v796 = vlaneseq
    %v797 = vshrl.u32 %v796, 7
    %v798 = vsub.s32 1, %v797
    %v799 = vrot.slane %v780, %v798
    %v800 = vadd.f32 %v790, %v795
    %v801 = vadd.f32 %v791, %v799
    %vm802 = vcmp.gt.f32.partialorder %v800, 0.0
    %vm803 = vcmp.gt.f32.partialorder %v801, 0.0
    %v804 = vmin.f32 %v800, 0.0
    %v805 = vmin.f32 %v801, 0.0
    %v806 = vmul.f32 %v804, 1.442695
    %v807 = vpow.pop %v806
    %v808 = vmul.f32 %v805, 1.442695
    %v809 = vpow.pop %v808
    %v810 = vsub.f32 %v807, 1.0
    %v811 = vsub.f32 %v809, 1.0
    %v812 = vsel %vm802, %v800, %v810
    %v813 = vsel %vm803, %v801, %v811
    %814 = vst [vmem:[#allocation2] sm:$0xff] %v812
    %815 = vst [vmem:[#allocation2 + $0x8] sm:$0xff] %v813
    // Predicated region
    $region54: #{tpu_custom_call.1} parent=1 // pred_check
      _
    $region55: #{tpu_custom_call.1} parent=1 // pred_check_branch
      %817 = sbr.rel (0) target = $region57
    $region56: #{tpu_custom_call.1} parent=1 // pred_region
      %s819 = ssub.s32 256, 256
      %820 = vsyncadd [#allocation3], %s819
      %s822 = sshll.u32 [#allocation2], 4
      %s823 = int_to_ptr.vmem [resolvable:$true] %s822
      %825 = dma.vmem_to_hbm [thread:$0]  %s823, 256, %s13, [#allocation3]
    $region57: #{tpu_custom_call.1} parent=1 // pred_fallthru
      _
    // Predicated region
    $region58: #{tpu_custom_call.1} parent=1 // pred_check
      _
    $region59: #{tpu_custom_call.1} parent=1 // pred_check_branch
      %827 = sbr.rel (0) target = $region61
    $region60: #{tpu_custom_call.1} parent=1 // pred_region
      %828 = dma.done [#allocation3], 256
    $region61: #{tpu_custom_call.1} parent=1 // pred_fallthru
      _
    %829 = vsyncpa [#allocation3], 1

</llo_original>
